<compile_context>
chip_gen: v5e
topology: v5e:2x2
jax: 0.10.0
libtpu: 0.0.40
codegen_flags: <defaults>
</compile_context>

<pallas_src>
import functools

import jax
import jax.numpy as jnp
from jax import lax
from jax.experimental import pallas as pl
from jax.experimental.pallas import tpu as pltpu

LEAK = 0.01  # nn.LeakyReLU() default negative_slope


def _leaky(x):
    return jnp.where(x >= 0, x, LEAK * x)


# ----------------------------------------------------------------------------
# One-time hardware / API probes (cached; run eagerly even under tracing).
# ----------------------------------------------------------------------------

@functools.lru_cache(maxsize=None)
def _vmem_capacity_bytes():
    try:
        info = pltpu.get_tpu_info()
        for attr in ("vmem_capacity_bytes", "vmem_size_bytes", "vmem_bytes"):
            v = getattr(info, attr, None)
            if v:
                return int(v)
    except Exception:
        pass
    return 64 << 20  # conservative fallback = v7x-sized VMEM


@functools.lru_cache(maxsize=None)
def _roll_sign():
    """+1 if pltpu.roll follows jnp.roll convention (out[i] = in[i - shift]),
    -1 if the opposite, 0 if roll is unusable (fall back to slice+concat)."""
    def probe_kernel(o_ref):
        i = lax.broadcasted_iota(jnp.int32, (8, 128), 0)
        o_ref[...] = pltpu.roll(i, 1, axis=0)

    try:
        with jax.ensure_compile_time_eval():
            r = pl.pallas_call(
                probe_kernel,
                out_shape=jax.ShapeDtypeStruct((8, 128), jnp.int32),
            )()
            r = jax.device_get(r)
        if int(r[1, 0]) == 0 and int(r[0, 0]) == 7:
            return 1
        if int(r[1, 0]) == 2 and int(r[0, 0]) == 1:
            return -1
    except Exception:
        pass
    return 0


def _shift_rows(a, offset, roll_sign):
    """Circular row shift of a 2-D (M, C) array: result[i] = a[(i + offset) % M]."""
    M = a.shape[0]
    if roll_sign != 0:
        return pltpu.roll(a, (-offset * roll_sign) % M, axis=0)
    # Fallback: slice + concat circular shift (correct, just less efficient).
    off = offset % M
    return jnp.concatenate([a[off:], a[:off]], axis=0)


# ----------------------------------------------------------------------------
# Kernel
# ----------------------------------------------------------------------------

def resblock_kernel(x_ref, halo_ref, w1_ref, b1_ref, w2_ref, b2_ref, o_ref,
                    *, TH, W, Cin, Cmid, Cout, mm_dtype, roll_sign):
    # x_ref    : (TH, W, Cin)       pre-activation rows of this tile (NHWC)
    # halo_ref : (2, W, Cin)        row above (0) / row below (1); zeros at borders
    # w1_ref   : (3, 3*Cin, Cmid)   3x3 conv, dx taps fused into K (dy-indexed)
    # b1_ref   : (1, Cmid)          fp32
    # w2_ref   : (Cmid, Cout)       1x1 conv
    # b2_ref   : (1, Cout)          fp32
    # o_ref    : (TH, W, Cout)
    x = x_ref[...]                              # model dtype (residual source)
    halo = halo_ref[...]

    # (TH+2, W, Cin) row slab = [row above | tile rows | row below].
    # LeakyReLU(0) = 0, so zero halos stay zero (== the conv's zero padding).
    slab = jnp.concatenate([halo[0:1], x, halo[1:2]], axis=0)
    a = _leaky(slab).astype(mm_dtype)

    M = (TH + 2) * W
    a = a.reshape(M, Cin)                       # layout-preserving (W % 8 == 0)

    # Image-column index of every flattened row, for border masking.
    col = lax.broadcasted_iota(jnp.int32, (TH + 2, W, Cin), 1).reshape(M, Cin)
    zero = jnp.zeros((), mm_dtype)

    # Column-shifted slabs via XLU roll + one select each (no sublane concats).
    a_left = jnp.where(col != 0, _shift_rows(a, -1, roll_sign), zero)       # a[., w-1]
    a_right = jnp.where(col != W - 1, _shift_rows(a, +1, roll_sign), zero)  # a[., w+1]

    # Fuse the three dx taps into the contraction dim: (M, 3*Cin).
    fused = jnp.concatenate([a_left, a, a_right], axis=1)

    # 3x3 conv (padding=1) == 3 row-shifted matmuls with K = 3*Cin.
    acc = jnp.zeros((TH * W, Cmid), jnp.float32)
    for dy in range(3):
        acc = acc + jnp.dot(fused[dy * W:(dy + TH) * W, :], w1_ref[dy],
                            preferred_element_type=jnp.float32)
    acc = acc + b1_ref[...]                     # fp32 bias broadcast

    # Second LeakyReLU + 1x1 conv (operands in matmul dtype, fp32 accumulation).
    h = _leaky(acc).astype(mm_dtype)
    y = jnp.dot(h, w2_ref[...], preferred_element_type=jnp.float32) + b2_ref[...]

    # Residual add with the pre-activation input, single 3-D store.
    out = x.reshape(TH * W, Cin).astype(jnp.float32) + y
    o_ref[...] = out.reshape(TH, W, Cout).astype(o_ref.dtype)


# ----------------------------------------------------------------------------
# VMEM accounting / tile-size selection
# ----------------------------------------------------------------------------

def _footprint_bytes(TH, W, Cin, Cmid, Cout, in_item, act_item):
    """Conservative per-grid-step VMEM footprint."""
    M = (TH + 2) * W
    io_blocks = 2 * TH * W * (Cin + Cout) * in_item        # double-buffered x / out
    halo = 2 * 2 * W * Cin * in_item                       # double-buffered halo
    weights = 2 * (9 * Cin * Cmid + Cmid * Cout) * act_item + 2 * (Cmid + Cout) * 4
    slabs = 6 * M * Cin * act_item                         # a + shifted + fused(3x)
    inter = TH * W * (4 * Cmid + act_item * Cmid + 8 * Cout)  # acc, h, y, out
    return io_blocks + halo + weights + slabs + inter


def _pick_tile_rows(H, W, Cin, Cmid, Cout, in_item, act_item, budget_bytes):
    def fits(th):
        return _footprint_bytes(th, W, Cin, Cmid, Cout, in_item, act_item) <= budget_bytes

    if not fits(1):
        return 1
    th = 1
    while th < H and fits(th + 1):              # footprint is monotonic in TH
        th += 1
    cap_th = th
    # Prefer an exact divisor of H (no ragged padding) when it is not much
    # smaller than the VMEM-optimal tile; otherwise go ragged (wrapper pads H).
    best_div = max(d for d in range(1, cap_th + 1) if H % d == 0)
    if 2 * best_div >= cap_th:
        return best_div
    return cap_th


# ----------------------------------------------------------------------------
# Wrapper
# ----------------------------------------------------------------------------

def res_block(x_nchw, w1_oihw, b1, w2_oimn, b2, *, tile_rows=None,
              matmul_dtype=None, vmem_limit_bytes=None):
    """x_nchw: (N, Cin, H, W). Conv weights in PyTorch OIHW layout.

    matmul_dtype: optional (e.g. jnp.bfloat16) dtype for MXU operands while
    keeping fp32 accumulation; None keeps the model dtype (bit-faithful path).
    """
    N, Cin, H, W = x_nchw.shape
    Cmid = w1_oihw.shape[0]
    Cout = w2_oimn.shape[0]
    assert Cin == Cout, "residual add requires in_channels == out_channels"
    assert w1_oihw.shape == (Cmid, Cin, 3, 3)
    assert w2_oimn.shape == (Cout, Cmid, 1, 1)

    in_dt = jnp.dtype(x_nchw.dtype)
    mm_dt = jnp.dtype(matmul_dtype) if matmul_dtype is not None else in_dt

    # Generation-aware VMEM budgets (v7x 64 MiB vs v5e/v6e 128 MiB).
    cap = _vmem_capacity_bytes()
    if vmem_limit_bytes is None:
        vmem_limit_bytes = min(cap * 3 // 4, 112 << 20)     # 48 MiB v7x, 96 MiB v5e/v6e
    tile_budget = min(cap * 3 // 10, 48 << 20)               # ~19 MiB v7x, ~38 MiB others

    # NCHW -> NHWC (channels on lanes).
    x = jnp.transpose(x_nchw, (0, 2, 3, 1))                  # (N, H, W, Cin)

    # Pad W to a sublane multiple so in-kernel reshapes/slices stay layout
    # preserving; zero columns reproduce the conv's own zero padding.
    Wp = -(-W // 8) * 8
    if Wp != W:
        x = jnp.pad(x, ((0, 0), (0, 0), (0, Wp - W), (0, 0)))

    in_item = in_dt.itemsize
    act_item = mm_dt.itemsize

    if tile_rows is None:
        TH = _pick_tile_rows(H, Wp, Cin, Cmid, Cout, in_item, act_item, tile_budget)
        n_h = -(-H // TH)
        if N * n_h < 2 and H > 1:
            TH = -(-H // 2)            # keep both v7x TensorCores busy
            n_h = -(-H // TH)
    else:
        TH = int(tile_rows)
        n_h = -(-H // TH)

    # Ragged H: pad to a tile multiple with zero rows (exact, sliced off below).
    Hp = n_h * TH
    if Hp != H:
        x = jnp.pad(x, ((0, 0), (0, Hp - H), (0, 0), (0, 0)))

    # Small halo side input: for tile i, row above (i*TH - 1) and row below
    # (i*TH + TH); zeros at the image top/bottom. Size ~ 2/TH of x.
    zrow = jnp.zeros((N, 1, Wp, Cin), x.dtype)
    above = jnp.concatenate([zrow, x[:, TH - 1:Hp - 1:TH]], axis=1)   # (N, n_h, Wp, Cin)
    below = jnp.concatenate([x[:, TH:Hp:TH], zrow], axis=1)           # (N, n_h, Wp, Cin)
    halo = jnp.stack([above, below], axis=2)                           # (N, n_h, 2, Wp, Cin)

    # OIHW -> (3, 3*Cin, Cmid) with the dx taps fused along K; 1x1 -> (Cmid, Cout).
    w1_f = jnp.transpose(w1_oihw, (2, 3, 1, 0)).reshape(3, 3 * Cin, Cmid).astype(mm_dt)
    w2_m = jnp.transpose(w2_oimn[:, :, 0, 0], (1, 0)).astype(mm_dt)
    b1r = b1.reshape(1, Cmid).astype(jnp.float32)
    b2r = b2.reshape(1, Cout).astype(jnp.float32)

    kernel = functools.partial(resblock_kernel, TH=TH, W=Wp, Cin=Cin,
                               Cmid=Cmid, Cout=Cout, mm_dtype=mm_dt,
                               roll_sign=_roll_sign())

    out_nhwc = pl.pallas_call(
        kernel,
        out_shape=jax.ShapeDtypeStruct((N, Hp, Wp, Cout), x.dtype),
        grid=(N, n_h),
        in_specs=[
            # Tiled, auto-pipelined input rows (also the residual source).
            pl.BlockSpec((None, TH, Wp, Cin), lambda n, i: (n, i, 0, 0)),
            # Per-tile 2-row halo.
            pl.BlockSpec((None, None, 2, Wp, Cin), lambda n, i: (n, i, 0, 0, 0)),
            # Weights / biases: constant index maps -> DMA'd once, VMEM resident.
            pl.BlockSpec((3, 3 * Cin, Cmid), lambda n, i: (0, 0, 0)),
            pl.BlockSpec((1, Cmid), lambda n, i: (0, 0)),
            pl.BlockSpec((Cmid, Cout), lambda n, i: (0, 0)),
            pl.BlockSpec((1, Cout), lambda n, i: (0, 0)),
        ],
        out_specs=pl.BlockSpec((None, TH, Wp, Cout), lambda n, i: (n, i, 0, 0)),
        compiler_params=pltpu.CompilerParams(
            # Independent output tiles -> both axes parallel (v7x 2-TC sharding).
            dimension_semantics=("parallel", "parallel"),
            vmem_limit_bytes=int(vmem_limit_bytes),
        ),
    )(x, halo, w1_f, b1r, w2_m, b2r)

    if Hp != H or Wp != W:
        out_nhwc = out_nhwc[:, :H, :W, :]
    # NHWC -> NCHW
    return jnp.transpose(out_nhwc, (0, 3, 1, 2))


# ----------------------------------------------------------------------------
# Pure-JAX reference + self-test
# ----------------------------------------------------------------------------

def res_block_reference(x_nchw, w1_oihw, b1, w2_oimn, b2):
    """Pure-JAX reference of the PyTorch forward (NCHW conv semantics)."""
    a = _leaky(x_nchw)
    y1 = lax.conv_general_dilated(
        a, w1_oihw, window_strides=(1, 1), padding=((1, 1), (1, 1)),
        dimension_numbers=("NCHW", "OIHW", "NCHW"))
    y1 = y1 + b1[None, :, None, None]
    h = _leaky(y1)
    y2 = lax.conv_general_dilated(
        h, w2_oimn, window_strides=(1, 1), padding=((0, 0), (0, 0)),
        dimension_numbers=("NCHW", "OIHW", "NCHW"))
    y2 = y2 + b2[None, :, None, None]
    return x_nchw + y2


if __name__ == "__main__":
    key = jax.random.PRNGKey(0)
    k_x, k_w1, k_b1, k_w2, k_b2 = jax.random.split(key, 5)

    N, C, Hs, Ws = 2, 4, 16, 16            # in_channels == mid == out == 4
    x = jax.random.normal(k_x, (N, C, Hs, Ws), jnp.float32)
    # Deterministic synthetic params with PyTorch Conv2d shapes (OIHW + bias).
    w1 = 0.2 * jax.random.normal(k_w1, (C, C, 3, 3), jnp.float32)
    b1 = 0.1 * jax.random.normal(k_b1, (C,), jnp.float32)
    w2 = 0.2 * jax.random.normal(k_w2, (C, C, 1, 1), jnp.float32)
    b2 = 0.1 * jax.random.normal(k_b2, (C,), jnp.float32)

    ref = res_block_reference(x, w1, b1, w2, b2)

    # Multi-tile path (TH=8 -> 2 row tiles per image, real interior halos).
    out_tiled = jax.block_until_ready(res_block(x, w1, b1, w2, b2, tile_rows=8))
    assert out_tiled.shape == (N, C, Hs, Ws)
    assert jnp.allclose(out_tiled, ref, atol=1e-4, rtol=1e-4), "tiled mismatch"

    # Auto tile-size path (VMEM-budgeted TH).
    out_auto = jax.block_until_ready(res_block(x, w1, b1, w2, b2))
    assert jnp.allclose(out_auto, ref, atol=1e-4, rtol=1e-4), "auto-tile mismatch"

    # Ragged-H path (TH=5 does not divide H=16 -> zero-padded last tile).
    out_ragged = jax.block_until_ready(res_block(x, w1, b1, w2, b2, tile_rows=5))
    assert jnp.allclose(out_ragged, ref, atol=1e-4, rtol=1e-4), "ragged mismatch"

    # Non-multiple-of-8 W + single image (W padding + even-grid split path).
    x2 = jax.random.normal(k_x, (1, C, 10, 12), jnp.float32)
    ref2 = res_block_reference(x2, w1, b1, w2, b2)
    out2 = jax.block_until_ready(res_block(x2, w1, b1, w2, b2))
    assert out2.shape == (1, C, 10, 12)
    assert jnp.allclose(out2, ref2, atol=1e-4, rtol=1e-4), "odd-shape mismatch"

    # bf16 MXU-operand path (fp32 accumulation) -> looser tolerance.
    out_bf16 = jax.block_until_ready(
        res_block(x, w1, b1, w2, b2, matmul_dtype=jnp.bfloat16))
    assert jnp.allclose(out_bf16, ref, atol=5e-2, rtol=5e-2), "bf16 mismatch"

    print("KERNEL_OK")
</pallas_src>

<mosaic_0001>
module attributes {stable_mosaic.version = 11 : i64} {
  func.func @resblock_kernel(%arg0: i32, %arg1: i32, %arg2: memref<1x8x16x4xf32, #tpu.memory_space<vmem>>, %arg3: memref<1x1x2x16x4xf32, #tpu.memory_space<vmem>>, %arg4: memref<3x12x4xf32, #tpu.memory_space<vmem>>, %arg5: memref<1x4xf32, #tpu.memory_space<vmem>>, %arg6: memref<4x4xf32, #tpu.memory_space<vmem>>, %arg7: memref<1x4xf32, #tpu.memory_space<vmem>>, %arg8: memref<1x8x16x4xf32, #tpu.memory_space<vmem>>) attributes {dimension_semantics = [#tpu.dimension_semantics<parallel>, #tpu.dimension_semantics<parallel>], iteration_bounds = array<i64: 2, 2>, scalar_prefetch = 0 : i64, scratch_operands = 0 : i64, tpu.core_type = #tpu.core_type<tc>, window_params = [{transform_indices = @transform_0, window_bounds = array<i64: 1, 8, 16, 4>}, {transform_indices = @transform_1, window_bounds = array<i64: 1, 1, 2, 16, 4>}, {pipeline_mode = #tpu.pipeline_mode<synchronous>, transform_indices = @transform_2, window_bounds = array<i64: 3, 12, 4>}, {pipeline_mode = #tpu.pipeline_mode<synchronous>, transform_indices = @transform_3, window_bounds = array<i64: 1, 4>}, {pipeline_mode = #tpu.pipeline_mode<synchronous>, transform_indices = @transform_4, window_bounds = array<i64: 4, 4>}, {pipeline_mode = #tpu.pipeline_mode<synchronous>, transform_indices = @transform_5, window_bounds = array<i64: 1, 4>}, {transform_indices = @transform_6, window_bounds = array<i64: 1, 8, 16, 4>}]} {
    %c0 = arith.constant 0 : index
    %c0_0 = arith.constant 0 : index
    %c0_1 = arith.constant 0 : index
    %c0_2 = arith.constant 0 : index
    %0 = vector.load %arg2[%c0, %c0_0, %c0_1, %c0_2] : memref<1x8x16x4xf32, #tpu.memory_space<vmem>>, vector<1x8x16x4xf32>
    %1 = vector.shape_cast %0 : vector<1x8x16x4xf32> to vector<8x16x4xf32>
    %c0_3 = arith.constant 0 : index
    %c0_4 = arith.constant 0 : index
    %c0_5 = arith.constant 0 : index
    %c0_6 = arith.constant 0 : index
    %c0_7 = arith.constant 0 : index
    %2 = vector.load %arg3[%c0_3, %c0_4, %c0_5, %c0_6, %c0_7] : memref<1x1x2x16x4xf32, #tpu.memory_space<vmem>>, vector<1x1x2x16x4xf32>
    %3 = vector.shape_cast %2 : vector<1x1x2x16x4xf32> to vector<2x16x4xf32>
    %4 = vector.extract_strided_slice %3 {offsets = [0, 0, 0], sizes = [1, 16, 4], strides = [1, 1, 1]} : vector<2x16x4xf32> to vector<1x16x4xf32>
    %5 = vector.extract_strided_slice %3 {offsets = [1, 0, 0], sizes = [1, 16, 4], strides = [1, 1, 1]} : vector<2x16x4xf32> to vector<1x16x4xf32>
    %6 = tpu.concatenate %4, %1, %5 in 0 : vector<1x16x4xf32>, vector<8x16x4xf32>, vector<1x16x4xf32> -> vector<10x16x4xf32>
    %cst = arith.constant 0.000000e+00 : f32
    %7 = vector.broadcast %cst : f32 to vector<10x16x4xf32>
    %8 = arith.cmpf oge, %6, %7 : vector<10x16x4xf32>
    %cst_8 = arith.constant 0.00999999977 : f32
    %9 = vector.broadcast %cst_8 : f32 to vector<10x16x4xf32>
    %10 = arith.mulf %9, %6 : vector<10x16x4xf32>
    %11 = arith.select %8, %6, %10 : vector<10x16x4xi1>, vector<10x16x4xf32>
    %12 = vector.shape_cast %11 : vector<10x16x4xf32> to vector<160x4xf32>
    %13 = tpu.iota {dimensions = array<i32: 1>} : vector<10x16x4xi32>
    %14 = vector.shape_cast %13 : vector<10x16x4xi32> to vector<160x4xi32>
    %c0_i32 = arith.constant 0 : i32
    %15 = vector.broadcast %c0_i32 : i32 to vector<160x4xi32>
    %16 = arith.cmpi ne, %14, %15 : vector<160x4xi32>
    %17 = vector.extract_strided_slice %12 {offsets = [159, 0], sizes = [1, 4], strides = [1, 1]} : vector<160x4xf32> to vector<1x4xf32>
    %18 = vector.extract_strided_slice %12 {offsets = [0, 0], sizes = [159, 4], strides = [1, 1]} : vector<160x4xf32> to vector<159x4xf32>
    %19 = tpu.concatenate %17, %18 in 0 : vector<1x4xf32>, vector<159x4xf32> -> vector<160x4xf32>
    %cst_9 = arith.constant 0.000000e+00 : f32
    %20 = vector.broadcast %cst_9 : f32 to vector<160x4xf32>
    %21 = arith.select %16, %19, %20 : vector<160x4xi1>, vector<160x4xf32>
    %c15_i32 = arith.constant 15 : i32
    %22 = vector.broadcast %c15_i32 : i32 to vector<160x4xi32>
    %23 = arith.cmpi ne, %14, %22 : vector<160x4xi32>
    %24 = vector.extract_strided_slice %12 {offsets = [1, 0], sizes = [159, 4], strides = [1, 1]} : vector<160x4xf32> to vector<159x4xf32>
    %25 = vector.extract_strided_slice %12 {offsets = [0, 0], sizes = [1, 4], strides = [1, 1]} : vector<160x4xf32> to vector<1x4xf32>
    %26 = tpu.concatenate %24, %25 in 0 : vector<159x4xf32>, vector<1x4xf32> -> vector<160x4xf32>
    %cst_10 = arith.constant 0.000000e+00 : f32
    %27 = vector.broadcast %cst_10 : f32 to vector<160x4xf32>
    %28 = arith.select %23, %26, %27 : vector<160x4xi1>, vector<160x4xf32>
    %29 = tpu.concatenate %21, %12, %28 in 1 : vector<160x4xf32>, vector<160x4xf32>, vector<160x4xf32> -> vector<160x12xf32>
    %cst_11 = arith.constant 0.000000e+00 : f32
    %30 = vector.broadcast %cst_11 : f32 to vector<128x4xf32>
    %31 = vector.extract_strided_slice %29 {offsets = [0, 0], sizes = [128, 12], strides = [1, 1]} : vector<160x12xf32> to vector<128x12xf32>
    %c0_12 = arith.constant 0 : index
    %c0_13 = arith.constant 0 : index
    %c0_14 = arith.constant 0 : index
    %32 = vector.load %arg4[%c0_12, %c0_13, %c0_14] : memref<3x12x4xf32, #tpu.memory_space<vmem>>, vector<1x12x4xf32>
    %33 = vector.shape_cast %32 : vector<1x12x4xf32> to vector<12x4xf32>
    %cst_15 = arith.constant dense<0.000000e+00> : vector<128x4xf32>
    %34 = tpu.matmul %31, %33, %cst_15 {dimension_numbers = #tpu.dot_dimension_numbers<[1], [0], [0], [1], [0, 0, 1, 1], [], []>} : vector<128x12xf32>, vector<12x4xf32>, vector<128x4xf32> -> vector<128x4xf32>
    %35 = arith.addf %30, %34 : vector<128x4xf32>
    %36 = vector.extract_strided_slice %29 {offsets = [16, 0], sizes = [128, 12], strides = [1, 1]} : vector<160x12xf32> to vector<128x12xf32>
    %c1 = arith.constant 1 : index
    %c0_16 = arith.constant 0 : index
    %c0_17 = arith.constant 0 : index
    %37 = vector.load %arg4[%c1, %c0_16, %c0_17] : memref<3x12x4xf32, #tpu.memory_space<vmem>>, vector<1x12x4xf32>
    %38 = vector.shape_cast %37 : vector<1x12x4xf32> to vector<12x4xf32>
    %cst_18 = arith.constant dense<0.000000e+00> : vector<128x4xf32>
    %39 = tpu.matmul %36, %38, %cst_18 {dimension_numbers = #tpu.dot_dimension_numbers<[1], [0], [0], [1], [0, 0, 1, 1], [], []>} : vector<128x12xf32>, vector<12x4xf32>, vector<128x4xf32> -> vector<128x4xf32>
    %40 = arith.addf %35, %39 : vector<128x4xf32>
    %41 = vector.extract_strided_slice %29 {offsets = [32, 0], sizes = [128, 12], strides = [1, 1]} : vector<160x12xf32> to vector<128x12xf32>
    %c2 = arith.constant 2 : index
    %c0_19 = arith.constant 0 : index
    %c0_20 = arith.constant 0 : index
    %42 = vector.load %arg4[%c2, %c0_19, %c0_20] : memref<3x12x4xf32, #tpu.memory_space<vmem>>, vector<1x12x4xf32>
    %43 = vector.shape_cast %42 : vector<1x12x4xf32> to vector<12x4xf32>
    %cst_21 = arith.constant dense<0.000000e+00> : vector<128x4xf32>
    %44 = tpu.matmul %41, %43, %cst_21 {dimension_numbers = #tpu.dot_dimension_numbers<[1], [0], [0], [1], [0, 0, 1, 1], [], []>} : vector<128x12xf32>, vector<12x4xf32>, vector<128x4xf32> -> vector<128x4xf32>
    %45 = arith.addf %40, %44 : vector<128x4xf32>
    %c0_22 = arith.constant 0 : index
    %c0_23 = arith.constant 0 : index
    %46 = vector.load %arg5[%c0_22, %c0_23] : memref<1x4xf32, #tpu.memory_space<vmem>>, vector<1x4xf32>
    %47 = vector.broadcast %46 : vector<1x4xf32> to vector<128x4xf32>
    %48 = arith.addf %45, %47 : vector<128x4xf32>
    %cst_24 = arith.constant 0.000000e+00 : f32
    %49 = vector.broadcast %cst_24 : f32 to vector<128x4xf32>
    %50 = arith.cmpf oge, %48, %49 : vector<128x4xf32>
    %cst_25 = arith.constant 0.00999999977 : f32
    %51 = vector.broadcast %cst_25 : f32 to vector<128x4xf32>
    %52 = arith.mulf %51, %48 : vector<128x4xf32>
    %53 = arith.select %50, %48, %52 : vector<128x4xi1>, vector<128x4xf32>
    %c0_26 = arith.constant 0 : index
    %c0_27 = arith.constant 0 : index
    %54 = vector.load %arg6[%c0_26, %c0_27] : memref<4x4xf32, #tpu.memory_space<vmem>>, vector<4x4xf32>
    %cst_28 = arith.constant dense<0.000000e+00> : vector<128x4xf32>
    %55 = tpu.matmul %53, %54, %cst_28 {dimension_numbers = #tpu.dot_dimension_numbers<[1], [0], [0], [1], [0, 0, 1, 1], [], []>} : vector<128x4xf32>, vector<4x4xf32>, vector<128x4xf32> -> vector<128x4xf32>
    %c0_29 = arith.constant 0 : index
    %c0_30 = arith.constant 0 : index
    %56 = vector.load %arg7[%c0_29, %c0_30] : memref<1x4xf32, #tpu.memory_space<vmem>>, vector<1x4xf32>
    %57 = vector.broadcast %56 : vector<1x4xf32> to vector<128x4xf32>
    %58 = arith.addf %55, %57 : vector<128x4xf32>
    %59 = vector.shape_cast %1 : vector<8x16x4xf32> to vector<128x4xf32>
    %60 = arith.addf %59, %58 : vector<128x4xf32>
    %61 = vector.shape_cast %60 : vector<128x4xf32> to vector<8x16x4xf32>
    %c0_31 = arith.constant 0 : index
    %c0_32 = arith.constant 0 : index
    %c0_33 = arith.constant 0 : index
    %c0_34 = arith.constant 0 : index
    %62 = vector.load %arg8[%c0_31, %c0_32, %c0_33, %c0_34] : memref<1x8x16x4xf32, #tpu.memory_space<vmem>>, vector<1x8x16x4xf32>
    %63 = vector.shape_cast %62 : vector<1x8x16x4xf32> to vector<8x16x4xf32>
    %64 = vector.shape_cast %61 : vector<8x16x4xf32> to vector<1x8x16x4xf32>
    tpu.vector_store %arg8[%c0_31, %c0_32, %c0_33, %c0_34], %64 {strides = array<i32>} : memref<1x8x16x4xf32, #tpu.memory_space<vmem>>, vector<1x8x16x4xf32>,
    return
  }
  func.func @transform_0(%arg0: i32, %arg1: i32) -> (i32, i32, i32, i32) {
    %c0_i32 = arith.constant 0 : i32
    %c0_i32_0 = arith.constant 0 : i32
    %c0_i32_1 = arith.constant 0 : i32
    return %arg0, %arg1, %c0_i32, %c0_i32_0 : i32, i32, i32, i32
  }
  func.func @transform_1(%arg0: i32, %arg1: i32) -> (i32, i32, i32, i32, i32) {
    %c0_i32 = arith.constant 0 : i32
    %c0_i32_0 = arith.constant 0 : i32
    %c0_i32_1 = arith.constant 0 : i32
    %c0_i32_2 = arith.constant 0 : i32
    return %arg0, %arg1, %c0_i32, %c0_i32_0, %c0_i32_1 : i32, i32, i32, i32, i32
  }
  func.func @transform_2(%arg0: i32, %arg1: i32) -> (i32, i32, i32) {
    %c0_i32 = arith.constant 0 : i32
    %c0_i32_0 = arith.constant 0 : i32
    %c0_i32_1 = arith.constant 0 : i32
    %c0_i32_2 = arith.constant 0 : i32
    return %c0_i32, %c0_i32_0, %c0_i32_1 : i32, i32, i32
  }
  func.func @transform_3(%arg0: i32, %arg1: i32) -> (i32, i32) {
    %c0_i32 = arith.constant 0 : i32
    %c0_i32_0 = arith.constant 0 : i32
    %c0_i32_1 = arith.constant 0 : i32
    return %c0_i32, %c0_i32_0 : i32, i32
  }
  func.func @transform_4(%arg0: i32, %arg1: i32) -> (i32, i32) {
    %c0_i32 = arith.constant 0 : i32
    %c0_i32_0 = arith.constant 0 : i32
    %c0_i32_1 = arith.constant 0 : i32
    return %c0_i32, %c0_i32_0 : i32, i32
  }
  func.func @transform_5(%arg0: i32, %arg1: i32) -> (i32, i32) {
    %c0_i32 = arith.constant 0 : i32
    %c0_i32_0 = arith.constant 0 : i32
    %c0_i32_1 = arith.constant 0 : i32
    return %c0_i32, %c0_i32_0 : i32, i32
  }
  func.func @transform_6(%arg0: i32, %arg1: i32) -> (i32, i32, i32, i32) {
    %c0_i32 = arith.constant 0 : i32
    %c0_i32_0 = arith.constant 0 : i32
    %c0_i32_1 = arith.constant 0 : i32
    return %arg0, %arg1, %c0_i32, %c0_i32_0 : i32, i32, i32, i32
  }
}

</mosaic_0001>

<llo_original>
// kernel: tpu_custom_call.1
$region0: #{tpu_custom_call.1}
  #allocation0 [shape = 'u32[]', space=smem, size = 0x4, offset = 0x4, fixed_abs, tag = 'smem constant byte address 0x4 - core index']
  #allocation1 [shape = 'u32[72,128]{1,0:T(1,128)}', space=vmem, size = 0x9000, scoped, tag = 'internal scratch']
  %s0 = inlined_call_operand.vmem [shape: f32[2,16,16,4], index: 0, kind: input, shape index: {}]
  %s1 = inlined_call_operand.vmem [shape: f32[2,2,2,16,4], index: 1, kind: input, shape index: {}]
  %s2 = inlined_call_operand.vmem [shape: f32[3,12,4], index: 2, kind: input, shape index: {}]
  %s3 = inlined_call_operand.vmem [shape: f32[1,4], index: 3, kind: input, shape index: {}]
  %s4 = inlined_call_operand.vmem [shape: f32[4,4], index: 4, kind: input, shape index: {}]
  %s5 = inlined_call_operand.vmem [shape: f32[1,4], index: 5, kind: input, shape index: {}]
  %s6 = inlined_call_operand.vmem [shape: f32[2,16,16,4], index: 6, kind: output, shape index: {}]
  %s7 = sld [smem:[#allocation0]]
  $region57: #{tpu_custom_call.1} parent=0
    _
  %s9 = ssub.s32 1, %s7
  %s10 = scalar_select 0, %s9, %s7
  loop: start=0, step=1, limit=6
  $region2: #{tpu_custom_call.1} parent=0 // loop_pre_header
    _
  $region3: #{tpu_custom_call.1} parent=0 // loop_header
    %s12 = sphi 0, %s16
    %p13 = scmp.ge.s32.totalorder %s12, 6
    %s19 = sphi 0, %s31
    %s20 = sphi 0, %s27
    %s21 = sphi 0, %s19
    %s22 = sphi 0, %s20
    %s23 = sphi 0, %s21
    %s24 = sphi 0, %s22
    %s36 = sphi 0, %s38
    %s39 = sphi 0, %s36
    %s40 = sphi 0, %s39
    %s56 = sphi 0, %s40
    %s64 = sphi 0, %s66
    %s67 = sphi 0, %s64
    %s68 = sphi 0, %s67
    %s84 = sphi 0, %s68
    %s88 = sphi 0, %s88
    %s90 = sphi 0, %s88
    %s91 = sphi 0, %s90
    %s105 = sphi 0, %s91
    %s109 = sphi 0, %s109
    %s111 = sphi 0, %s109
    %s112 = sphi 0, %s111
    %s126 = sphi 0, %s112
    %s130 = sphi 0, %s130
    %s132 = sphi 0, %s130
    %s133 = sphi 0, %s132
    %s147 = sphi 0, %s133
    %s151 = sphi 0, %s151
    %s153 = sphi 0, %s151
    %s154 = sphi 0, %s153
    %s168 = sphi 0, %s154
    %s176 = sphi 0, %s178
    %s179 = sphi 0, %s176
    %s180 = sphi 0, %s179
    %s196 = sphi 0, %s180
  $region4: #{tpu_custom_call.1} parent=0 // loop_header_branch
    %15 = sbr.rel (%p13) target = $region8
  $region5: #{tpu_custom_call.1} parent=0 // loop_body
    %s17 = ssub.s32 %s12, 1
    %s18 = ssub.s32 %s12, 2
    %s25 = sadd.s32 1, %s20
    %p26 = scmp.ge.s32.totalorder %s25, 2
    %s27 = scalar_select %p26, 0, %s25
    %s28 = sadd.s32 1, %s19
    %s29 = scalar_select %p26, %s28, %s19
    %p30 = scmp.ge.s32.totalorder %s29, 2
    %s31 = scalar_select %p30, 0, %s29
    %s32 = ssub.s32 %s19, %s31
    %s33 = ssub.s32 %s20, %s27
    %s34 = sor.u32 %s32, %s33
    %p35 = scmp.eq.s32.totalorder %s34, 0
    %s37 = sadd.s32 %s36, 1
    %s38 = scalar_select %p35, %s36, %s37
    %p41 = pneg %p35
    %p42 = scmp.eq.s32.totalorder %s12, 3
    %p43 = por %p41, %p42
    %p44 = scmp.ne.s32.totalorder %s36, %s39
    %p45 = scmp.eq.s32.totalorder %s12, 0
    %p46 = por %p44, %p45
    %p47 = scmp.ne.s32.totalorder %s36, %s39
    %p48 = scmp.eq.s32.totalorder %s17, 3
    %p49 = por %p47, %p48
    %p50 = scmp.ne.s32.totalorder %s39, %s40
    %p51 = scmp.eq.s32.totalorder %s17, 0
    %p52 = por %p50, %p51
    %p53 = scmp.ne.s32.totalorder %s39, %s40
    %p54 = scmp.eq.s32.totalorder %s18, 3
    %p55 = por %p53, %p54
    %p57 = scmp.ne.s32.totalorder %s40, %s56
    %p58 = scmp.eq.s32.totalorder %s18, 0
    %p59 = por %p57, %p58
    %s60 = ssub.s32 %s19, %s31
    %s61 = ssub.s32 %s20, %s27
    %s62 = sor.u32 %s60, %s61
    %p63 = scmp.eq.s32.totalorder %s62, 0
    %s65 = sadd.s32 %s64, 1
    %s66 = scalar_select %p63, %s64, %s65
    %p69 = pneg %p63
    %p70 = scmp.eq.s32.totalorder %s12, 3
    %p71 = por %p69, %p70
    %p72 = scmp.ne.s32.totalorder %s64, %s67
    %p73 = scmp.eq.s32.totalorder %s12, 0
    %p74 = por %p72, %p73
    %p75 = scmp.ne.s32.totalorder %s64, %s67
    %p76 = scmp.eq.s32.totalorder %s17, 3
    %p77 = por %p75, %p76
    %p78 = scmp.ne.s32.totalorder %s67, %s68
    %p79 = scmp.eq.s32.totalorder %s17, 0
    %p80 = por %p78, %p79
    %p81 = scmp.ne.s32.totalorder %s67, %s68
    %p82 = scmp.eq.s32.totalorder %s18, 3
    %p83 = por %p81, %p82
    %p85 = scmp.ne.s32.totalorder %s68, %s84
    %p86 = scmp.eq.s32.totalorder %s18, 0
    %p87 = por %p85, %p86
    %s89 = sadd.s32 %s88, 1
    %p92 = scmp.eq.s32.totalorder %s12, 3
    %p93 = scmp.ne.s32.totalorder %s88, %s90
    %p94 = scmp.eq.s32.totalorder %s12, 0
    %p95 = por %p93, %p94
    %p96 = scmp.ne.s32.totalorder %s88, %s90
    %p97 = scmp.eq.s32.totalorder %s17, 3
    %p98 = por %p96, %p97
    %p99 = scmp.ne.s32.totalorder %s90, %s91
    %p100 = scmp.eq.s32.totalorder %s17, 0
    %p101 = por %p99, %p100
    %p102 = scmp.ne.s32.totalorder %s90, %s91
    %p103 = scmp.eq.s32.totalorder %s18, 3
    %p104 = por %p102, %p103
    %p106 = scmp.ne.s32.totalorder %s91, %s105
    %p107 = scmp.eq.s32.totalorder %s18, 0
    %p108 = por %p106, %p107
    %s110 = sadd.s32 %s109, 1
    %p113 = scmp.eq.s32.totalorder %s12, 3
    %p114 = scmp.ne.s32.totalorder %s109, %s111
    %p115 = scmp.eq.s32.totalorder %s12, 0
    %p116 = por %p114, %p115
    %p117 = scmp.ne.s32.totalorder %s109, %s111
    %p118 = scmp.eq.s32.totalorder %s17, 3
    %p119 = por %p117, %p118
    %p120 = scmp.ne.s32.totalorder %s111, %s112
    %p121 = scmp.eq.s32.totalorder %s17, 0
    %p122 = por %p120, %p121
    %p123 = scmp.ne.s32.totalorder %s111, %s112
    %p124 = scmp.eq.s32.totalorder %s18, 3
    %p125 = por %p123, %p124
    %p127 = scmp.ne.s32.totalorder %s112, %s126
    %p128 = scmp.eq.s32.totalorder %s18, 0
    %p129 = por %p127, %p128
    %s131 = sadd.s32 %s130, 1
    %p134 = scmp.eq.s32.totalorder %s12, 3
    %p135 = scmp.ne.s32.totalorder %s130, %s132
    %p136 = scmp.eq.s32.totalorder %s12, 0
    %p137 = por %p135, %p136
    %p138 = scmp.ne.s32.totalorder %s130, %s132
    %p139 = scmp.eq.s32.totalorder %s17, 3
    %p140 = por %p138, %p139
    %p141 = scmp.ne.s32.totalorder %s132, %s133
    %p142 = scmp.eq.s32.totalorder %s17, 0
    %p143 = por %p141, %p142
    %p144 = scmp.ne.s32.totalorder %s132, %s133
    %p145 = scmp.eq.s32.totalorder %s18, 3
    %p146 = por %p144, %p145
    %p148 = scmp.ne.s32.totalorder %s133, %s147
    %p149 = scmp.eq.s32.totalorder %s18, 0
    %p150 = por %p148, %p149
    %s152 = sadd.s32 %s151, 1
    %p155 = scmp.eq.s32.totalorder %s12, 3
    %p156 = scmp.ne.s32.totalorder %s151, %s153
    %p157 = scmp.eq.s32.totalorder %s12, 0
    %p158 = por %p156, %p157
    %p159 = scmp.ne.s32.totalorder %s151, %s153
    %p160 = scmp.eq.s32.totalorder %s17, 3
    %p161 = por %p159, %p160
    %p162 = scmp.ne.s32.totalorder %s153, %s154
    %p163 = scmp.eq.s32.totalorder %s17, 0
    %p164 = por %p162, %p163
    %p165 = scmp.ne.s32.totalorder %s153, %s154
    %p166 = scmp.eq.s32.totalorder %s18, 3
    %p167 = por %p165, %p166
    %p169 = scmp.ne.s32.totalorder %s154, %s168
    %p170 = scmp.eq.s32.totalorder %s18, 0
    %p171 = por %p169, %p170
    %s172 = ssub.s32 %s19, %s31
    %s173 = ssub.s32 %s20, %s27
    %s174 = sor.u32 %s172, %s173
    %p175 = scmp.eq.s32.totalorder %s174, 0
    %s177 = sadd.s32 %s176, 1
    %s178 = scalar_select %p175, %s176, %s177
    %p181 = pneg %p175
    %p182 = scmp.eq.s32.totalorder %s12, 3
    %p183 = por %p181, %p182
    %p184 = scmp.ne.s32.totalorder %s176, %s179
    %p185 = scmp.eq.s32.totalorder %s12, 0
    %p186 = por %p184, %p185
    %p187 = scmp.ne.s32.totalorder %s176, %s179
    %p188 = scmp.eq.s32.totalorder %s17, 3
    %p189 = por %p187, %p188
    %p190 = scmp.ne.s32.totalorder %s179, %s180
    %p191 = scmp.eq.s32.totalorder %s17, 0
    %p192 = por %p190, %p191
    %p193 = scmp.ne.s32.totalorder %s179, %s180
    %p194 = scmp.eq.s32.totalorder %s18, 3
    %p195 = por %p193, %p194
    %p197 = scmp.ne.s32.totalorder %s180, %s196
    %p198 = scmp.eq.s32.totalorder %s18, 0
    %p199 = por %p197, %p198
    %p200 = scmp.le.s32.totalorder 1, %s12
    %p201 = scmp.lt.s32.totalorder %s12, 5
    %p202 = pnand %p200, %p201
    %p203 = pneg %p202
    // Predicated region
    $region9: #{tpu_custom_call.1} parent=5 // pred_check
      _
    $region10: #{tpu_custom_call.1} parent=5 // pred_check_branch
      %205 = sbr.rel (%p202) target = $region12
    $region11: #{tpu_custom_call.1} parent=5 // pred_region
      %s206 = ssub.s32 %s12, 1
      // Predicated region
      $region13: #{tpu_custom_call.1} parent=11 // pred_check
        %p207 = pneg %p101
      $region14: #{tpu_custom_call.1} parent=11 // pred_check_branch
        %209 = sbr.rel (%p207) target = $region16
      $region15: #{tpu_custom_call.1} parent=11 // pred_region
        _
      $region16: #{tpu_custom_call.1} parent=11 // pred_fallthru
        _
      // Predicated region
      $region17: #{tpu_custom_call.1} parent=11 // pred_check
        %p210 = pneg %p122
      $region18: #{tpu_custom_call.1} parent=11 // pred_check_branch
        %212 = sbr.rel (%p210) target = $region20
      $region19: #{tpu_custom_call.1} parent=11 // pred_region
        _
      $region20: #{tpu_custom_call.1} parent=11 // pred_fallthru
        _
      // Predicated region
      $region21: #{tpu_custom_call.1} parent=11 // pred_check
        %p213 = pneg %p143
      $region22: #{tpu_custom_call.1} parent=11 // pred_check_branch
        %215 = sbr.rel (%p213) target = $region24
      $region23: #{tpu_custom_call.1} parent=11 // pred_region
        _
      $region24: #{tpu_custom_call.1} parent=11 // pred_fallthru
        _
      // Predicated region
      $region25: #{tpu_custom_call.1} parent=11 // pred_check
        %p216 = pneg %p164
      $region26: #{tpu_custom_call.1} parent=11 // pred_check_branch
        %218 = sbr.rel (%p216) target = $region28
      $region27: #{tpu_custom_call.1} parent=11 // pred_region
        _
      $region28: #{tpu_custom_call.1} parent=11 // pred_fallthru
        _
    $region12: #{tpu_custom_call.1} parent=5 // pred_fallthru
      _
    %p219 = scmp.lt.s32.totalorder %s12, 4
    // Predicated region
    $region29: #{tpu_custom_call.1} parent=5 // pred_check
      %p220 = pneg %p219
    $region30: #{tpu_custom_call.1} parent=5 // pred_check_branch
      %222 = sbr.rel (%p220) target = $region32
    $region31: #{tpu_custom_call.1} parent=5 // pred_region
      // Predicated region
      $region33: #{tpu_custom_call.1} parent=31 // pred_check
        %p223 = pneg %p46
      $region34: #{tpu_custom_call.1} parent=31 // pred_check_branch
        %225 = sbr.rel (%p223) target = $region36
      $region35: #{tpu_custom_call.1} parent=31 // pred_region
        %s226 = smul.u32 8, %s20
        %p227 = scmp.lt.s32.totalorder %s19, 1
        %s228 = scalar_select %p227, %s19, 1
        %p229 = scmp.lt.s32.totalorder %s226, 15
        %s230 = scalar_select %p229, %s226, 15
        %s231 = smul.addr %s230, 2
        %s232 = smul.addr %s228, 32
        %s233 = sadd.s32 %s231, %s232
        %s234 = smul.addr %s233, 8
        %s235 = scalar_lea.vmem %s0, %s234
        %s236 = smul.u32 8, %s20
      $region36: #{tpu_custom_call.1} parent=31 // pred_fallthru
        _
      // Predicated region
      $region37: #{tpu_custom_call.1} parent=31 // pred_check
        %p237 = pneg %p74
      $region38: #{tpu_custom_call.1} parent=31 // pred_check_branch
        %239 = sbr.rel (%p237) target = $region40
      $region39: #{tpu_custom_call.1} parent=31 // pred_region
        %p240 = scmp.lt.s32.totalorder %s19, 1
        %s241 = scalar_select %p240, %s19, 1
        %p242 = scmp.lt.s32.totalorder %s20, 1
        %s243 = scalar_select %p242, %s20, 1
        %s244 = smul.addr %s243, 4
        %s245 = smul.addr %s241, 8
        %s246 = sadd.s32 %s244, %s245
        %s247 = smul.addr %s246, 8
        %s248 = scalar_lea.vmem %s1, %s247
      $region40: #{tpu_custom_call.1} parent=31 // pred_fallthru
        _
    $region32: #{tpu_custom_call.1} parent=5 // pred_fallthru
      _
    %p249 = scmp.le.s32.totalorder 1, %s12
    %p250 = scmp.lt.s32.totalorder %s12, 5
    %p251 = pnand %p249, %p250
    %p252 = pneg %p251
    // Predicated region
    $region41: #{tpu_custom_call.1} parent=5 // pred_check
      _
    $region42: #{tpu_custom_call.1} parent=5 // pred_check_branch
      %254 = sbr.rel (%p251) target = $region44
    $region43: #{tpu_custom_call.1} parent=5 // pred_region
      %s255 = ssub.s32 %s12, 1
      %s256 = smul.u32 8, %s22
      %p257 = scmp.lt.s32.totalorder %s21, 1
      %s258 = scalar_select %p257, %s21, 1
      %p259 = scmp.lt.s32.totalorder %s256, 15
      %s260 = scalar_select %p259, %s256, 15
      %s261 = smul.addr %s260, 2
      %s262 = smul.addr %s258, 32
      %s263 = sadd.s32 %s261, %s262
      %s264 = smul.addr %s263, 8
      %s265 = scalar_lea.vmem %s0, %s264
      %p266 = pneg %p52
      %p267 = pneg %p49
      %p268 = scmp.lt.s32.totalorder %s21, 1
      %s269 = scalar_select %p268, %s21, 1
      %p270 = scmp.lt.s32.totalorder %s22, 1
      %s271 = scalar_select %p270, %s22, 1
      %s272 = smul.addr %s271, 4
      %s273 = smul.addr %s269, 8
      %s274 = sadd.s32 %s272, %s273
      %s275 = smul.addr %s274, 8
      %s276 = scalar_lea.vmem %s1, %s275
      %p277 = pneg %p80
      %p278 = pneg %p77
      %p279 = pneg %p101
      %p280 = pneg %p98
      %p281 = pneg %p122
      %p282 = pneg %p119
      %p283 = pneg %p143
      %p284 = pneg %p140
      %p285 = pneg %p164
      %p286 = pneg %p161
      %p287 = pneg %p192
      %p288 = pneg %p189
      %s289 = smul.u32 8, %s22
      %p290 = scmp.lt.s32.totalorder %s21, 1
      %s291 = scalar_select %p290, %s21, 1
      %p292 = scmp.lt.s32.totalorder %s289, 15
      %s293 = scalar_select %p292, %s289, 15
      %s294 = smul.addr %s293, 2
      %s295 = smul.addr %s291, 32
      %s296 = sadd.s32 %s294, %s295
      %s297 = smul.addr %s296, 8
      %s298 = scalar_lea.vmem %s6, %s297
      %s299 = smul.u32 8, %s22
      %p300 = scmp.lt.s32.totalorder %s21, 1
      %s301 = scalar_select %p300, %s21, 1
      %p302 = scmp.lt.s32.totalorder %s299, 15
      %s303 = scalar_select %p302, %s299, 15
      %s304 = smul.addr %s303, 2
      %s305 = smul.addr %s301, 32
      %s306 = sadd.s32 %s304, %s305
      %s307 = smul.addr %s306, 8
      %s308 = scalar_lea.vmem %s0, %s307
      %s309 = smul.u32 8, %s22
      %p310 = scmp.lt.s32.totalorder %s21, 1
      %s311 = scalar_select %p310, %s21, 1
      %p312 = scmp.lt.s32.totalorder %s22, 1
      %s313 = scalar_select %p312, %s22, 1
      %s314 = smul.addr %s313, 4
      %s315 = smul.addr %s311, 8
      %s316 = sadd.s32 %s314, %s315
      %s317 = smul.addr %s316, 8
      %s318 = scalar_lea.vmem %s1, %s317
      %s319 = smul.u32 8, %s22
      %p320 = scmp.lt.s32.totalorder %s21, 1
      %s321 = scalar_select %p320, %s21, 1
      %p322 = scmp.lt.s32.totalorder %s319, 15
      %s323 = scalar_select %p322, %s319, 15
      %s324 = smul.addr %s323, 2
      %s325 = smul.addr %s321, 32
      %s326 = sadd.s32 %s324, %s325
      %s327 = smul.addr %s326, 8
      %s328 = scalar_lea.vmem %s6, %s327
      %s329 = smul.u32 8, %s22
      %v330 = vld [vmem:[%s308] sm:$0xff]
      %v331 = vld [vmem:[%s308 + $0x8] sm:$0xff]
      %v332 = vld [vmem:[%s308 + $0x10] sm:$0xff]
      %v333 = vld [vmem:[%s308 + $0x18] sm:$0xff]
      %v334 = vld [vmem:[%s308 + $0x20] sm:$0xff]
      %v335 = vld [vmem:[%s308 + $0x28] sm:$0xff]
      %v336 = vld [vmem:[%s308 + $0x30] sm:$0xff]
      %v337 = vld [vmem:[%s308 + $0x38] sm:$0xff]
      %v338 = vld [vmem:[%s308 + $0x40] sm:$0xff]
      %v339 = vld [vmem:[%s308 + $0x48] sm:$0xff]
      %v340 = vld [vmem:[%s308 + $0x50] sm:$0xff]
      %v341 = vld [vmem:[%s308 + $0x58] sm:$0xff]
      %v342 = vld [vmem:[%s308 + $0x60] sm:$0xff]
      %v343 = vld [vmem:[%s308 + $0x68] sm:$0xff]
      %v344 = vld [vmem:[%s308 + $0x70] sm:$0xff]
      %v345 = vld [vmem:[%s308 + $0x78] sm:$0xff]
      %v346 = vld [vmem:[%s318] sm:$0xff]
      %v347 = vld [vmem:[%s318 + $0x8] sm:$0xff]
      %v348 = vld [vmem:[%s318 + $0x10] sm:$0xff]
      %v349 = vld [vmem:[%s318 + $0x18] sm:$0xff]
      %vm350 = vcmp.ge.f32.partialorder %v346, 0.0
      %vm351 = vcmp.ge.f32.partialorder %v347, 0.0
      %vm352 = vcmp.ge.f32.partialorder %v330, 0.0
      %vm353 = vcmp.ge.f32.partialorder %v331, 0.0
      %vm354 = vcmp.ge.f32.partialorder %v332, 0.0
      %vm355 = vcmp.ge.f32.partialorder %v333, 0.0
      %vm356 = vcmp.ge.f32.partialorder %v334, 0.0
      %vm357 = vcmp.ge.f32.partialorder %v335, 0.0
      %vm358 = vcmp.ge.f32.partialorder %v336, 0.0
      %vm359 = vcmp.ge.f32.partialorder %v337, 0.0
      %vm360 = vcmp.ge.f32.partialorder %v338, 0.0
      %vm361 = vcmp.ge.f32.partialorder %v339, 0.0
      %vm362 = vcmp.ge.f32.partialorder %v340, 0.0
      %vm363 = vcmp.ge.f32.partialorder %v341, 0.0
      %vm364 = vcmp.ge.f32.partialorder %v342, 0.0
      %vm365 = vcmp.ge.f32.partialorder %v343, 0.0
      %vm366 = vcmp.ge.f32.partialorder %v344, 0.0
      %vm367 = vcmp.ge.f32.partialorder %v345, 0.0
      %vm368 = vcmp.ge.f32.partialorder %v348, 0.0
      %vm369 = vcmp.ge.f32.partialorder %v349, 0.0
      %v370 = vmul.f32 %v346, 0.01
      %v371 = vmul.f32 %v347, 0.01
      %v372 = vmul.f32 %v330, 0.01
      %v373 = vmul.f32 %v331, 0.01
      %v374 = vmul.f32 %v332, 0.01
      %v375 = vmul.f32 %v333, 0.01
      %v376 = vmul.f32 %v334, 0.01
      %v377 = vmul.f32 %v335, 0.01
      %v378 = vmul.f32 %v336, 0.01
      %v379 = vmul.f32 %v337, 0.01
      %v380 = vmul.f32 %v338, 0.01
      %v381 = vmul.f32 %v339, 0.01
      %v382 = vmul.f32 %v340, 0.01
      %v383 = vmul.f32 %v341, 0.01
      %v384 = vmul.f32 %v342, 0.01
      %v385 = vmul.f32 %v343, 0.01
      %v386 = vmul.f32 %v344, 0.01
      %v387 = vmul.f32 %v345, 0.01
      %v388 = vmul.f32 %v348, 0.01
      %v389 = vmul.f32 %v349, 0.01
      %v390 = vsel %vm350, %v346, %v370
      %v391 = vsel %vm351, %v347, %v371
      %v392 = vsel %vm352, %v330, %v372
      %v393 = vsel %vm353, %v331, %v373
      %v394 = vsel %vm354, %v332, %v374
      %v395 = vsel %vm355, %v333, %v375
      %v396 = vsel %vm356, %v334, %v376
      %v397 = vsel %vm357, %v335, %v377
      %v398 = vsel %vm358, %v336, %v378
      %v399 = vsel %vm359, %v337, %v379
      %v400 = vsel %vm360, %v338, %v380
      %v401 = vsel %vm361, %v339, %v381
      %v402 = vsel %vm362, %v340, %v382
      %v403 = vsel %vm363, %v341, %v383
      %v404 = vsel %vm364, %v342, %v384
      %v405 = vsel %vm365, %v343, %v385
      %v406 = vsel %vm366, %v344, %v386
      %v407 = vsel %vm367, %v345, %v387
      %v408 = vsel %vm368, %v348, %v388
      %v409 = vsel %vm369, %v349, %v389
      %v410 = vlaneseq
      %v411 = vshrl.u32 %v410, 7
      %v412 = vadd.s32 %v411, 8
      %vm413 = vcmp.ne.s32.totalorder %v411, 0
      %vm414 = vcmp.ne.s32.totalorder %v412, 0
      %v416 = vrot.slane %v409, 7
      %vm437 = vcmask 1040384
      %v438 = vrot.slane %v390, 7
      %v439 = vrot.slane %v391, 7
      %v440 = vsel %vm437, %v438, %v439
      %v441 = vrot.slane %v392, 7
      %v442 = vsel %vm437, %v439, %v441
      %v443 = vrot.slane %v393, 7
      %v444 = vsel %vm437, %v441, %v443
      %v445 = vrot.slane %v394, 7
      %v446 = vsel %vm437, %v443, %v445
      %v447 = vrot.slane %v395, 7
      %v448 = vsel %vm437, %v445, %v447
      %v449 = vrot.slane %v396, 7
      %v450 = vsel %vm437, %v447, %v449
      %v451 = vrot.slane %v397, 7
      %v452 = vsel %vm437, %v449, %v451
      %v453 = vrot.slane %v398, 7
      %v454 = vsel %vm437, %v451, %v453
      %v455 = vrot.slane %v399, 7
      %v456 = vsel %vm437, %v453, %v455
      %v457 = vrot.slane %v400, 7
      %v458 = vsel %vm437, %v455, %v457
      %v459 = vrot.slane %v401, 7
      %v460 = vsel %vm437, %v457, %v459
      %v461 = vrot.slane %v402, 7
      %v462 = vsel %vm437, %v459, %v461
      %v463 = vrot.slane %v403, 7
      %v464 = vsel %vm437, %v461, %v463
      %v465 = vrot.slane %v404, 7
      %v466 = vsel %vm437, %v463, %v465
      %v467 = vrot.slane %v405, 7
      %v468 = vsel %vm437, %v465, %v467
      %v469 = vrot.slane %v406, 7
      %v470 = vsel %vm437, %v467, %v469
      %v471 = vrot.slane %v407, 7
      %v472 = vsel %vm437, %v469, %v471
      %v473 = vrot.slane %v408, 7
      %v474 = vsel %vm437, %v471, %v473
      %v475 = vsel %vm437, %v473, %v416
      %v496 = vsel %vm437, %v416, %v438
      %v497 = vsel %vm413, %v496, 0.0
      %v498 = vsel %vm414, %v440, 0.0
      %v499 = vsel %vm413, %v442, 0.0
      %v500 = vsel %vm414, %v444, 0.0
      %v501 = vsel %vm413, %v446, 0.0
      %v502 = vsel %vm414, %v448, 0.0
      %v503 = vsel %vm413, %v450, 0.0
      %v504 = vsel %vm414, %v452, 0.0
      %v505 = vsel %vm413, %v454, 0.0
      %v506 = vsel %vm414, %v456, 0.0
      %v507 = vsel %vm413, %v458, 0.0
      %v508 = vsel %vm414, %v460, 0.0
      %v509 = vsel %vm413, %v462, 0.0
      %v510 = vsel %vm414, %v464, 0.0
      %v511 = vsel %vm413, %v466, 0.0
      %v512 = vsel %vm414, %v468, 0.0
      %v513 = vsel %vm413, %v470, 0.0
      %v514 = vsel %vm414, %v472, 0.0
      %v515 = vsel %vm413, %v474, 0.0
      %v516 = vsel %vm414, %v475, 0.0
      %vm517 = vcmp.ne.s32.totalorder %v411, 15
      %vm518 = vcmp.ne.s32.totalorder %v412, 15
      %vm519 = vcmask 1046528
      %v520 = vrot.slane %v390, 1
      %v521 = vrot.slane %v391, 1
      %v522 = vsel %vm519, %v520, %v521
      %v523 = vrot.slane %v392, 1
      %v524 = vsel %vm519, %v521, %v523
      %v525 = vrot.slane %v393, 1
      %v526 = vsel %vm519, %v523, %v525
      %v527 = vrot.slane %v394, 1
      %v528 = vsel %vm519, %v525, %v527
      %v529 = vrot.slane %v395, 1
      %v530 = vsel %vm519, %v527, %v529
      %v531 = vrot.slane %v396, 1
      %v532 = vsel %vm519, %v529, %v531
      %v533 = vrot.slane %v397, 1
      %v534 = vsel %vm519, %v531, %v533
      %v535 = vrot.slane %v398, 1
      %v536 = vsel %vm519, %v533, %v535
      %v537 = vrot.slane %v399, 1
      %v538 = vsel %vm519, %v535, %v537
      %v539 = vrot.slane %v400, 1
      %v540 = vsel %vm519, %v537, %v539
      %v541 = vrot.slane %v401, 1
      %v542 = vsel %vm519, %v539, %v541
      %v543 = vrot.slane %v402, 1
      %v544 = vsel %vm519, %v541, %v543
      %v545 = vrot.slane %v403, 1
      %v546 = vsel %vm519, %v543, %v545
      %v547 = vrot.slane %v404, 1
      %v548 = vsel %vm519, %v545, %v547
      %v549 = vrot.slane %v405, 1
      %v550 = vsel %vm519, %v547, %v549
      %v551 = vrot.slane %v406, 1
      %v552 = vsel %vm519, %v549, %v551
      %v553 = vrot.slane %v407, 1
      %v554 = vsel %vm519, %v551, %v553
      %v555 = vrot.slane %v408, 1
      %v556 = vsel %vm519, %v553, %v555
      %v557 = vrot.slane %v409, 1
      %v558 = vsel %vm519, %v555, %v557
      %v580 = vsel %vm519, %v557, %v520
      %v581 = vsel %vm517, %v522, 0.0
      %v582 = vsel %vm518, %v524, 0.0
      %v583 = vsel %vm517, %v526, 0.0
      %v584 = vsel %vm518, %v528, 0.0
      %v585 = vsel %vm517, %v530, 0.0
      %v586 = vsel %vm518, %v532, 0.0
      %v587 = vsel %vm517, %v534, 0.0
      %v588 = vsel %vm518, %v536, 0.0
      %v589 = vsel %vm517, %v538, 0.0
      %v590 = vsel %vm518, %v540, 0.0
      %v591 = vsel %vm517, %v542, 0.0
      %v592 = vsel %vm518, %v544, 0.0
      %v593 = vsel %vm517, %v546, 0.0
      %v594 = vsel %vm518, %v548, 0.0
      %v595 = vsel %vm517, %v550, 0.0
      %v596 = vsel %vm518, %v552, 0.0
      %v597 = vsel %vm517, %v554, 0.0
      %v598 = vsel %vm518, %v556, 0.0
      %v599 = vsel %vm517, %v558, 0.0
      %v600 = vsel %vm518, %v580, 0.0
      %601 = vrot.lane.b32.xlu0 %v390, 4
      %v602 = vpop.permute.xlu0 %601
      %603 = vrot.lane.b32.xlu0 %v391, 4
      %v604 = vpop.permute.xlu0 %603
      %605 = vrot.lane.b32.xlu0 %v392, 4
      %v606 = vpop.permute.xlu0 %605
      %607 = vrot.lane.b32.xlu0 %v393, 4
      %v608 = vpop.permute.xlu0 %607
      %609 = vrot.lane.b32.xlu0 %v394, 4
      %v610 = vpop.permute.xlu0 %609
      %611 = vrot.lane.b32.xlu0 %v395, 4
      %v612 = vpop.permute.xlu0 %611
      %613 = vrot.lane.b32.xlu0 %v396, 4
      %v614 = vpop.permute.xlu0 %613
      %615 = vrot.lane.b32.xlu0 %v397, 4
      %v616 = vpop.permute.xlu0 %615
      %617 = vrot.lane.b32.xlu0 %v398, 4
      %v618 = vpop.permute.xlu0 %617
      %619 = vrot.lane.b32.xlu0 %v399, 4
      %v620 = vpop.permute.xlu0 %619
      %621 = vrot.lane.b32.xlu0 %v400, 4
      %v622 = vpop.permute.xlu0 %621
      %623 = vrot.lane.b32.xlu0 %v401, 4
      %v624 = vpop.permute.xlu0 %623
      %625 = vrot.lane.b32.xlu0 %v402, 4
      %v626 = vpop.permute.xlu0 %625
      %627 = vrot.lane.b32.xlu0 %v403, 4
      %v628 = vpop.permute.xlu0 %627
      %629 = vrot.lane.b32.xlu0 %v404, 4
      %v630 = vpop.permute.xlu0 %629
      %631 = vrot.lane.b32.xlu0 %v405, 4
      %v632 = vpop.permute.xlu0 %631
      %633 = vrot.lane.b32.xlu0 %v406, 4
      %v634 = vpop.permute.xlu0 %633
      %635 = vrot.lane.b32.xlu0 %v407, 4
      %v636 = vpop.permute.xlu0 %635
      %637 = vrot.lane.b32.xlu0 %v408, 4
      %v638 = vpop.permute.xlu0 %637
      %639 = vrot.lane.b32.xlu0 %v409, 4
      %v640 = vpop.permute.xlu0 %639
      %681 = vrot.lane.b32.xlu0 %v581, 8
      %v682 = vpop.permute.xlu0 %681
      %683 = vrot.lane.b32.xlu0 %v582, 8
      %v684 = vpop.permute.xlu0 %683
      %685 = vrot.lane.b32.xlu0 %v583, 8
      %v686 = vpop.permute.xlu0 %685
      %687 = vrot.lane.b32.xlu0 %v584, 8
      %v688 = vpop.permute.xlu0 %687
      %689 = vrot.lane.b32.xlu0 %v585, 8
      %v690 = vpop.permute.xlu0 %689
      %691 = vrot.lane.b32.xlu0 %v586, 8
      %v692 = vpop.permute.xlu0 %691
      %693 = vrot.lane.b32.xlu0 %v587, 8
      %v694 = vpop.permute.xlu0 %693
      %695 = vrot.lane.b32.xlu0 %v588, 8
      %v696 = vpop.permute.xlu0 %695
      %697 = vrot.lane.b32.xlu0 %v589, 8
      %v698 = vpop.permute.xlu0 %697
      %699 = vrot.lane.b32.xlu0 %v590, 8
      %v700 = vpop.permute.xlu0 %699
      %701 = vrot.lane.b32.xlu0 %v591, 8
      %v702 = vpop.permute.xlu0 %701
      %703 = vrot.lane.b32.xlu0 %v592, 8
      %v704 = vpop.permute.xlu0 %703
      %705 = vrot.lane.b32.xlu0 %v593, 8
      %v706 = vpop.permute.xlu0 %705
      %707 = vrot.lane.b32.xlu0 %v594, 8
      %v708 = vpop.permute.xlu0 %707
      %709 = vrot.lane.b32.xlu0 %v595, 8
      %v710 = vpop.permute.xlu0 %709
      %711 = vrot.lane.b32.xlu0 %v596, 8
      %v712 = vpop.permute.xlu0 %711
      %713 = vrot.lane.b32.xlu0 %v597, 8
      %v714 = vpop.permute.xlu0 %713
      %715 = vrot.lane.b32.xlu0 %v598, 8
      %v716 = vpop.permute.xlu0 %715
      %717 = vrot.lane.b32.xlu0 %v599, 8
      %v718 = vpop.permute.xlu0 %717
      %719 = vrot.lane.b32.xlu0 %v600, 8
      %v720 = vpop.permute.xlu0 %719
      %vm741 = vcmask 31744
      %v742 = vsel %vm741, %v497, %v602
      %v743 = vsel %vm741, %v498, %v604
      %v744 = vsel %vm741, %v499, %v606
      %v745 = vsel %vm741, %v500, %v608
      %v746 = vsel %vm741, %v501, %v610
      %v747 = vsel %vm741, %v502, %v612
      %v748 = vsel %vm741, %v503, %v614
      %v749 = vsel %vm741, %v504, %v616
      %v750 = vsel %vm741, %v505, %v618
      %v751 = vsel %vm741, %v506, %v620
      %v752 = vsel %vm741, %v507, %v622
      %v753 = vsel %vm741, %v508, %v624
      %v754 = vsel %vm741, %v509, %v626
      %v755 = vsel %vm741, %v510, %v628
      %v756 = vsel %vm741, %v511, %v630
      %v757 = vsel %vm741, %v512, %v632
      %v758 = vsel %vm741, %v513, %v634
      %v759 = vsel %vm741, %v514, %v636
      %v760 = vsel %vm741, %v515, %v638
      %v761 = vsel %vm741, %v516, %v640
      %vm762 = vcmask 64512
      %v763 = vsel %vm762, %v742, %v682
      %v764 = vsel %vm762, %v743, %v684
      %v765 = vsel %vm762, %v744, %v686
      %v766 = vsel %vm762, %v745, %v688
      %v767 = vsel %vm762, %v746, %v690
      %v768 = vsel %vm762, %v747, %v692
      %v769 = vsel %vm762, %v748, %v694
      %v770 = vsel %vm762, %v749, %v696
      %v771 = vsel %vm762, %v750, %v698
      %v772 = vsel %vm762, %v751, %v700
      %v773 = vsel %vm762, %v752, %v702
      %v774 = vsel %vm762, %v753, %v704
      %v775 = vsel %vm762, %v754, %v706
      %v776 = vsel %vm762, %v755, %v708
      %v777 = vsel %vm762, %v756, %v710
      %v778 = vsel %vm762, %v757, %v712
      %v779 = vsel %vm762, %v758, %v714
      %v780 = vsel %vm762, %v759, %v716
      %v781 = vsel %vm762, %v760, %v718
      %v782 = vsel %vm762, %v761, %v720
      %v783 = vld [vmem:[%s2] sm:$0xff]
      %v784 = vld [vmem:[%s2 + $0x8] sm:$0xf]
      %s785 = scalar_lea.vmem %s2, 16
      %v786 = vld [vmem:[%s785] sm:$0xff]
      %v787 = vld [vmem:[%s785 + $0x8] sm:$0xf]
      %vm788 = vcmask 97280
      %v790 = vsel %vm788, %v765, 0
      %v793 = vsel %vm788, %v766, 0
      %v796 = vsel %vm788, %v767, 0
      %v799 = vsel %vm788, %v768, 0
      %v802 = vsel %vm788, %v769, 0
      %v805 = vsel %vm788, %v770, 0
      %v808 = vsel %vm788, %v771, 0
      %v811 = vsel %vm788, %v772, 0
      %v814 = vsel %vm788, %v773, 0
      %v817 = vsel %vm788, %v774, 0
      %v820 = vsel %vm788, %v775, 0
      %v823 = vsel %vm788, %v776, 0
      %v826 = vsel %vm788, %v777, 0
      %v829 = vsel %vm788, %v778, 0
      %v832 = vsel %vm788, %v779, 0
      %v835 = vsel %vm788, %v780, 0
      %vm837 = vcmask 1043456
      %v839 = vsel %vm837, %v787, 0
      %841 = vmatpush.msra.mxu0 0.0
      %842 = vmatpush.msra.mxu0 0.0
      %843 = vmatpush.msra.mxu0 0.0
      %844 = vmatpush.msra.mxu0 0.0
      %845 = vmatpush.msra.mxu0 0.0
      %846 = vmatpush.msra.mxu0 0.0
      %847 = vmatpush.msra.mxu0 0.0
      %848 = vmatpush.msra.mxu0 0.0
      %849 = vmatpush.msra.mxu0 0.0
      %850 = vmatpush.msra.mxu0 0.0
      %851 = vmatpush.msra.mxu0 0.0
      %852 = vmatpush.msra.mxu0 0.0
      %853 = vmatpush.msra.mxu0 0.0
      %854 = vmatpush.msra.mxu0 0.0
      %855 = vmatpush.msra.mxu0 %v839
      %856 = vmatpush.msra.mxu0 %v786
      %857 = vmatmul.f32.gmra.mxu0 %v790
      %v858 = vpop.f32.mrf.mxu0
      %v859 = vadd.f32 0.0, %v858
      %860 = vmatmul.f32.gmra.mxu0 %v793
      %v861 = vpop.f32.mrf.mxu0
      %v862 = vadd.f32 0.0, %v861
      %863 = vmatmul.f32.gmra.mxu0 %v796
      %v864 = vpop.f32.mrf.mxu0
      %v865 = vadd.f32 0.0, %v864
      %866 = vmatmul.f32.gmra.mxu0 %v799
      %v867 = vpop.f32.mrf.mxu0
      %v868 = vadd.f32 0.0, %v867
      %869 = vmatmul.f32.gmra.mxu0 %v802
      %v870 = vpop.f32.mrf.mxu0
      %v871 = vadd.f32 0.0, %v870
      %872 = vmatmul.f32.gmra.mxu0 %v805
      %v873 = vpop.f32.mrf.mxu0
      %v874 = vadd.f32 0.0, %v873
      %875 = vmatmul.f32.gmra.mxu0 %v808
      %v876 = vpop.f32.mrf.mxu0
      %v877 = vadd.f32 0.0, %v876
      %878 = vmatmul.f32.gmra.mxu0 %v811
      %v879 = vpop.f32.mrf.mxu0
      %v880 = vadd.f32 0.0, %v879
      %881 = vmatmul.f32.gmra.mxu0 %v814
      %v882 = vpop.f32.mrf.mxu0
      %v883 = vadd.f32 0.0, %v882
      %884 = vmatmul.f32.gmra.mxu0 %v817
      %v885 = vpop.f32.mrf.mxu0
      %v886 = vadd.f32 0.0, %v885
      %887 = vmatmul.f32.gmra.mxu0 %v820
      %v888 = vpop.f32.mrf.mxu0
      %v889 = vadd.f32 0.0, %v888
      %890 = vmatmul.f32.gmra.mxu0 %v823
      %v891 = vpop.f32.mrf.mxu0
      %v892 = vadd.f32 0.0, %v891
      %893 = vmatmul.f32.gmra.mxu0 %v826
      %v894 = vpop.f32.mrf.mxu0
      %v895 = vadd.f32 0.0, %v894
      %896 = vmatmul.f32.gmra.mxu0 %v829
      %v897 = vpop.f32.mrf.mxu0
      %v898 = vadd.f32 0.0, %v897
      %899 = vmatmul.f32.gmra.mxu0 %v832
      %v900 = vpop.f32.mrf.mxu0
      %v901 = vadd.f32 0.0, %v900
      %902 = vmatmul.f32.gmra.mxu0 %v835
      %v903 = vpop.f32.mrf.mxu0
      %v904 = vadd.f32 0.0, %v903
      %905 = vdwg.mxu0
      %v907 = vsel %vm788, %v763, 0
      %v910 = vsel %vm788, %v764, 0
      %v913 = vsel %vm837, %v784, 0
      %915 = vmatpush.msra.mxu0 0.0
      %916 = vmatpush.msra.mxu0 0.0
      %917 = vmatpush.msra.mxu0 0.0
      %918 = vmatpush.msra.mxu0 0.0
      %919 = vmatpush.msra.mxu0 0.0
      %920 = vmatpush.msra.mxu0 0.0
      %921 = vmatpush.msra.mxu0 0.0
      %922 = vmatpush.msra.mxu0 0.0
      %923 = vmatpush.msra.mxu0 0.0
      %924 = vmatpush.msra.mxu0 0.0
      %925 = vmatpush.msra.mxu0 0.0
      %926 = vmatpush.msra.mxu0 0.0
      %927 = vmatpush.msra.mxu0 0.0
      %928 = vmatpush.msra.mxu0 0.0
      %929 = vmatpush.msra.mxu0 %v913
      %930 = vmatpush.msra.mxu0 %v783
      %931 = vmatmul.f32.gmra.mxu0 %v907
      %v932 = vpop.f32.mrf.mxu0
      %v933 = vadd.f32 %v859, %v932
      %934 = vmatmul.f32.gmra.mxu0 %v910
      %v935 = vpop.f32.mrf.mxu0
      %v936 = vadd.f32 %v862, %v935
      %937 = vmatmul.f32.gmra.mxu0 %v790
      %v938 = vpop.f32.mrf.mxu0
      %v939 = vadd.f32 %v865, %v938
      %940 = vmatmul.f32.gmra.mxu0 %v793
      %v941 = vpop.f32.mrf.mxu0
      %v942 = vadd.f32 %v868, %v941
      %943 = vmatmul.f32.gmra.mxu0 %v796
      %v944 = vpop.f32.mrf.mxu0
      %v945 = vadd.f32 %v871, %v944
      %946 = vmatmul.f32.gmra.mxu0 %v799
      %v947 = vpop.f32.mrf.mxu0
      %v948 = vadd.f32 %v874, %v947
      %949 = vmatmul.f32.gmra.mxu0 %v802
      %v950 = vpop.f32.mrf.mxu0
      %v951 = vadd.f32 %v877, %v950
      %952 = vmatmul.f32.gmra.mxu0 %v805
      %v953 = vpop.f32.mrf.mxu0
      %v954 = vadd.f32 %v880, %v953
      %955 = vmatmul.f32.gmra.mxu0 %v808
      %v956 = vpop.f32.mrf.mxu0
      %v957 = vadd.f32 %v883, %v956
      %958 = vmatmul.f32.gmra.mxu0 %v811
      %v959 = vpop.f32.mrf.mxu0
      %v960 = vadd.f32 %v886, %v959
      %961 = vmatmul.f32.gmra.mxu0 %v814
      %v962 = vpop.f32.mrf.mxu0
      %v963 = vadd.f32 %v889, %v962
      %964 = vmatmul.f32.gmra.mxu0 %v817
      %v965 = vpop.f32.mrf.mxu0
      %v966 = vadd.f32 %v892, %v965
      %967 = vmatmul.f32.gmra.mxu0 %v820
      %v968 = vpop.f32.mrf.mxu0
      %v969 = vadd.f32 %v895, %v968
      %970 = vmatmul.f32.gmra.mxu0 %v823
      %v971 = vpop.f32.mrf.mxu0
      %v972 = vadd.f32 %v898, %v971
      %973 = vmatmul.f32.gmra.mxu0 %v826
      %v974 = vpop.f32.mrf.mxu0
      %v975 = vadd.f32 %v901, %v974
      %976 = vmatmul.f32.gmra.mxu0 %v829
      %v977 = vpop.f32.mrf.mxu0
      %v978 = vadd.f32 %v904, %v977
      %979 = vdwg.mxu0
      %s980 = scalar_lea.vmem %s2, 32
      %v981 = vld [vmem:[%s980] sm:$0xff]
      %v982 = vld [vmem:[%s980 + $0x8] sm:$0xf]
      %v984 = vsel %vm788, %v781, 0
      %v987 = vsel %vm788, %v782, 0
      %v990 = vsel %vm837, %v982, 0
      %992 = vmatpush.msra.mxu0 0.0
      %993 = vmatpush.msra.mxu0 0.0
      %994 = vmatpush.msra.mxu0 0.0
      %995 = vmatpush.msra.mxu0 0.0
      %996 = vmatpush.msra.mxu0 0.0
      %997 = vmatpush.msra.mxu0 0.0
      %998 = vmatpush.msra.mxu0 0.0
      %999 = vmatpush.msra.mxu0 0.0
      %1000 = vmatpush.msra.mxu0 0.0
      %1001 = vmatpush.msra.mxu0 0.0
      %1002 = vmatpush.msra.mxu0 0.0
      %1003 = vmatpush.msra.mxu0 0.0
      %1004 = vmatpush.msra.mxu0 0.0
      %1005 = vmatpush.msra.mxu0 0.0
      %1006 = vmatpush.msra.mxu0 %v990
      %1007 = vmatpush.msra.mxu0 %v981
      %1008 = vmatmul.f32.gmra.mxu0 %v796
      %v1009 = vpop.f32.mrf.mxu0
      %v1010 = vadd.f32 0.0, %v1009
      %1011 = vmatmul.f32.gmra.mxu0 %v799
      %v1012 = vpop.f32.mrf.mxu0
      %v1013 = vadd.f32 0.0, %v1012
      %1014 = vmatmul.f32.gmra.mxu0 %v802
      %v1015 = vpop.f32.mrf.mxu0
      %v1016 = vadd.f32 0.0, %v1015
      %1017 = vmatmul.f32.gmra.mxu0 %v805
      %v1018 = vpop.f32.mrf.mxu0
      %v1019 = vadd.f32 0.0, %v1018
      %1020 = vmatmul.f32.gmra.mxu0 %v808
      %v1021 = vpop.f32.mrf.mxu0
      %v1022 = vadd.f32 0.0, %v1021
      %1023 = vmatmul.f32.gmra.mxu0 %v811
      %v1024 = vpop.f32.mrf.mxu0
      %v1025 = vadd.f32 0.0, %v1024
      %1026 = vmatmul.f32.gmra.mxu0 %v814
      %v1027 = vpop.f32.mrf.mxu0
      %v1028 = vadd.f32 0.0, %v1027
      %1029 = vmatmul.f32.gmra.mxu0 %v817
      %v1030 = vpop.f32.mrf.mxu0
      %v1031 = vadd.f32 0.0, %v1030
      %1032 = vmatmul.f32.gmra.mxu0 %v820
      %v1033 = vpop.f32.mrf.mxu0
      %v1034 = vadd.f32 0.0, %v1033
      %1035 = vmatmul.f32.gmra.mxu0 %v823
      %v1036 = vpop.f32.mrf.mxu0
      %v1037 = vadd.f32 0.0, %v1036
      %1038 = vmatmul.f32.gmra.mxu0 %v826
      %v1039 = vpop.f32.mrf.mxu0
      %v1040 = vadd.f32 0.0, %v1039
      %1041 = vmatmul.f32.gmra.mxu0 %v829
      %v1042 = vpop.f32.mrf.mxu0
      %v1043 = vadd.f32 0.0, %v1042
      %1044 = vmatmul.f32.gmra.mxu0 %v832
      %v1045 = vpop.f32.mrf.mxu0
      %v1046 = vadd.f32 0.0, %v1045
      %1047 = vmatmul.f32.gmra.mxu0 %v835
      %v1048 = vpop.f32.mrf.mxu0
      %v1049 = vadd.f32 0.0, %v1048
      %1050 = vmatmul.f32.gmra.mxu0 %v984
      %v1051 = vpop.f32.mrf.mxu0
      %v1052 = vadd.f32 0.0, %v1051
      %1053 = vmatmul.f32.gmra.mxu0 %v987
      %v1054 = vpop.f32.mrf.mxu0
      %v1055 = vadd.f32 0.0, %v1054
      %1056 = vdwg.mxu0
      %v1057 = vadd.f32 %v933, %v1010
      %v1058 = vadd.f32 %v936, %v1013
      %v1059 = vadd.f32 %v939, %v1016
      %v1060 = vadd.f32 %v942, %v1019
      %v1061 = vadd.f32 %v945, %v1022
      %v1062 = vadd.f32 %v948, %v1025
      %v1063 = vadd.f32 %v951, %v1028
      %v1064 = vadd.f32 %v954, %v1031
      %v1065 = vadd.f32 %v957, %v1034
      %v1066 = vadd.f32 %v960, %v1037
      %v1067 = vadd.f32 %v963, %v1040
      %v1068 = vadd.f32 %v966, %v1043
      %v1069 = vadd.f32 %v969, %v1046
      %v1070 = vadd.f32 %v972, %v1049
      %v1071 = vadd.f32 %v975, %v1052
      %v1072 = vadd.f32 %v978, %v1055
      %v1073 = vld [vmem:[%s3] sm:$0x1]
      %v1075 = vperm.slane %v1073, 0
      %v1077 = vadd.f32 %v1057, %v1075
      %v1078 = vadd.f32 %v1058, %v1075
      %v1079 = vadd.f32 %v1059, %v1075
      %v1080 = vadd.f32 %v1060, %v1075
      %v1081 = vadd.f32 %v1061, %v1075
      %v1082 = vadd.f32 %v1062, %v1075
      %v1083 = vadd.f32 %v1063, %v1075
      %v1084 = vadd.f32 %v1064, %v1075
      %v1085 = vadd.f32 %v1065, %v1075
      %v1086 = vadd.f32 %v1066, %v1075
      %v1087 = vadd.f32 %v1067, %v1075
      %v1088 = vadd.f32 %v1068, %v1075
      %v1089 = vadd.f32 %v1069, %v1075
      %v1090 = vadd.f32 %v1070, %v1075
      %v1091 = vadd.f32 %v1071, %v1075
      %v1092 = vadd.f32 %v1072, %v1075
      %vm1093 = vcmp.ge.f32.partialorder %v1077, 0.0
      %vm1094 = vcmp.ge.f32.partialorder %v1078, 0.0
      %vm1095 = vcmp.ge.f32.partialorder %v1079, 0.0
      %vm1096 = vcmp.ge.f32.partialorder %v1080, 0.0
      %vm1097 = vcmp.ge.f32.partialorder %v1081, 0.0
      %vm1098 = vcmp.ge.f32.partialorder %v1082, 0.0
      %vm1099 = vcmp.ge.f32.partialorder %v1083, 0.0
      %vm1100 = vcmp.ge.f32.partialorder %v1084, 0.0
      %vm1101 = vcmp.ge.f32.partialorder %v1085, 0.0
      %vm1102 = vcmp.ge.f32.partialorder %v1086, 0.0
      %vm1103 = vcmp.ge.f32.partialorder %v1087, 0.0
      %vm1104 = vcmp.ge.f32.partialorder %v1088, 0.0
      %vm1105 = vcmp.ge.f32.partialorder %v1089, 0.0
      %vm1106 = vcmp.ge.f32.partialorder %v1090, 0.0
      %vm1107 = vcmp.ge.f32.partialorder %v1091, 0.0
      %vm1108 = vcmp.ge.f32.partialorder %v1092, 0.0
      %v1109 = vmul.f32 %v1077, 0.01
      %v1110 = vmul.f32 %v1078, 0.01
      %v1111 = vmul.f32 %v1079, 0.01
      %v1112 = vmul.f32 %v1080, 0.01
      %v1113 = vmul.f32 %v1081, 0.01
      %v1114 = vmul.f32 %v1082, 0.01
      %v1115 = vmul.f32 %v1083, 0.01
      %v1116 = vmul.f32 %v1084, 0.01
      %v1117 = vmul.f32 %v1085, 0.01
      %v1118 = vmul.f32 %v1086, 0.01
      %v1119 = vmul.f32 %v1087, 0.01
      %v1120 = vmul.f32 %v1088, 0.01
      %v1121 = vmul.f32 %v1089, 0.01
      %v1122 = vmul.f32 %v1090, 0.01
      %v1123 = vmul.f32 %v1091, 0.01
      %v1124 = vmul.f32 %v1092, 0.01
      %v1125 = vsel %vm1093, %v1077, %v1109
      %v1126 = vsel %vm1094, %v1078, %v1110
      %v1127 = vsel %vm1095, %v1079, %v1111
      %v1128 = vsel %vm1096, %v1080, %v1112
      %v1129 = vsel %vm1097, %v1081, %v1113
      %v1130 = vsel %vm1098, %v1082, %v1114
      %v1131 = vsel %vm1099, %v1083, %v1115
      %v1132 = vsel %vm1100, %v1084, %v1116
      %v1133 = vsel %vm1101, %v1085, %v1117
      %v1134 = vsel %vm1102, %v1086, %v1118
      %v1135 = vsel %vm1103, %v1087, %v1119
      %v1136 = vsel %vm1104, %v1088, %v1120
      %v1137 = vsel %vm1105, %v1089, %v1121
      %v1138 = vsel %vm1106, %v1090, %v1122
      %v1139 = vsel %vm1107, %v1091, %v1123
      %v1140 = vsel %vm1108, %v1092, %v1124
      %v1141 = vld [vmem:[%s4] sm:$0xf]
      %v1142 = vld [vmem:[%s5] sm:$0x1]
      %v1144 = vperm.slane %v1142, 0
      %v1147 = vsel %vm741, %v1125, 0
      %v1150 = vsel %vm741, %v1126, 0
      %v1153 = vsel %vm741, %v1127, 0
      %v1156 = vsel %vm741, %v1128, 0
      %v1159 = vsel %vm741, %v1129, 0
      %v1162 = vsel %vm741, %v1130, 0
      %v1165 = vsel %vm741, %v1131, 0
      %v1168 = vsel %vm741, %v1132, 0
      %v1171 = vsel %vm741, %v1133, 0
      %v1174 = vsel %vm741, %v1134, 0
      %v1177 = vsel %vm741, %v1135, 0
      %v1180 = vsel %vm741, %v1136, 0
      %v1183 = vsel %vm741, %v1137, 0
      %v1186 = vsel %vm741, %v1138, 0
      %v1189 = vsel %vm741, %v1139, 0
      %v1192 = vsel %vm741, %v1140, 0
      %v1195 = vsel %vm837, %v1141, 0
      %1197 = vmatpush.msra.mxu0 0.0
      %1198 = vmatpush.msra.mxu0 0.0
      %1199 = vmatpush.msra.mxu0 0.0
      %1200 = vmatpush.msra.mxu0 0.0
      %1201 = vmatpush.msra.mxu0 0.0
      %1202 = vmatpush.msra.mxu0 0.0
      %1203 = vmatpush.msra.mxu0 0.0
      %1204 = vmatpush.msra.mxu0 0.0
      %1205 = vmatpush.msra.mxu0 0.0
      %1206 = vmatpush.msra.mxu0 0.0
      %1207 = vmatpush.msra.mxu0 0.0
      %1208 = vmatpush.msra.mxu0 0.0
      %1209 = vmatpush.msra.mxu0 0.0
      %1210 = vmatpush.msra.mxu0 0.0
      %1211 = vmatpush.msra.mxu0 0.0
      %1212 = vmatpush.msra.mxu0 %v1195
      %1213 = vmatmul.f32.gmra.mxu0 %v1147
      %v1214 = vpop.f32.mrf.mxu0
      %v1215 = vadd.f32 %v1144, %v1214
      %1216 = vmatmul.f32.gmra.mxu0 %v1150
      %v1217 = vpop.f32.mrf.mxu0
      %v1218 = vadd.f32 %v1144, %v1217
      %1219 = vmatmul.f32.gmra.mxu0 %v1153
      %v1220 = vpop.f32.mrf.mxu0
      %v1221 = vadd.f32 %v1144, %v1220
      %1222 = vmatmul.f32.gmra.mxu0 %v1156
      %v1223 = vpop.f32.mrf.mxu0
      %v1224 = vadd.f32 %v1144, %v1223
      %1225 = vmatmul.f32.gmra.mxu0 %v1159
      %v1226 = vpop.f32.mrf.mxu0
      %v1227 = vadd.f32 %v1144, %v1226
      %1228 = vmatmul.f32.gmra.mxu0 %v1162
      %v1229 = vpop.f32.mrf.mxu0
      %v1230 = vadd.f32 %v1144, %v1229
      %1231 = vmatmul.f32.gmra.mxu0 %v1165
      %v1232 = vpop.f32.mrf.mxu0
      %v1233 = vadd.f32 %v1144, %v1232
      %1234 = vmatmul.f32.gmra.mxu0 %v1168
      %v1235 = vpop.f32.mrf.mxu0
      %v1236 = vadd.f32 %v1144, %v1235
      %1237 = vmatmul.f32.gmra.mxu0 %v1171
      %v1238 = vpop.f32.mrf.mxu0
      %v1239 = vadd.f32 %v1144, %v1238
      %1240 = vmatmul.f32.gmra.mxu0 %v1174
      %v1241 = vpop.f32.mrf.mxu0
      %v1242 = vadd.f32 %v1144, %v1241
      %1243 = vmatmul.f32.gmra.mxu0 %v1177
      %v1244 = vpop.f32.mrf.mxu0
      %v1245 = vadd.f32 %v1144, %v1244
      %1246 = vmatmul.f32.gmra.mxu0 %v1180
      %v1247 = vpop.f32.mrf.mxu0
      %v1248 = vadd.f32 %v1144, %v1247
      %1249 = vmatmul.f32.gmra.mxu0 %v1183
      %v1250 = vpop.f32.mrf.mxu0
      %v1251 = vadd.f32 %v1144, %v1250
      %1252 = vmatmul.f32.gmra.mxu0 %v1186
      %v1253 = vpop.f32.mrf.mxu0
      %v1254 = vadd.f32 %v1144, %v1253
      %1255 = vmatmul.f32.gmra.mxu0 %v1189
      %v1256 = vpop.f32.mrf.mxu0
      %v1257 = vadd.f32 %v1144, %v1256
      %1258 = vmatmul.f32.gmra.mxu0 %v1192
      %v1259 = vpop.f32.mrf.mxu0
      %v1260 = vadd.f32 %v1144, %v1259
      %1261 = vdwg.mxu0
      %v1262 = vadd.f32 %v330, %v1215
      %v1263 = vadd.f32 %v331, %v1218
      %v1264 = vadd.f32 %v332, %v1221
      %v1265 = vadd.f32 %v333, %v1224
      %v1266 = vadd.f32 %v334, %v1227
      %v1267 = vadd.f32 %v335, %v1230
      %v1268 = vadd.f32 %v336, %v1233
      %v1269 = vadd.f32 %v337, %v1236
      %v1270 = vadd.f32 %v338, %v1239
      %v1271 = vadd.f32 %v339, %v1242
      %v1272 = vadd.f32 %v340, %v1245
      %v1273 = vadd.f32 %v341, %v1248
      %v1274 = vadd.f32 %v342, %v1251
      %v1275 = vadd.f32 %v343, %v1254
      %v1276 = vadd.f32 %v344, %v1257
      %v1277 = vadd.f32 %v345, %v1260
      %1278 = vst.msk [vmem:[%s328] sm:$0xff] %vm741, %v1262
      %1279 = vst.msk [vmem:[%s328 + $0x8] sm:$0xff] %vm741, %v1263
      %1280 = vst.msk [vmem:[%s328 + $0x10] sm:$0xff] %vm741, %v1264
      %1281 = vst.msk [vmem:[%s328 + $0x18] sm:$0xff] %vm741, %v1265
      %1282 = vst.msk [vmem:[%s328 + $0x20] sm:$0xff] %vm741, %v1266
      %1283 = vst.msk [vmem:[%s328 + $0x28] sm:$0xff] %vm741, %v1267
      %1284 = vst.msk [vmem:[%s328 + $0x30] sm:$0xff] %vm741, %v1268
      %1285 = vst.msk [vmem:[%s328 + $0x38] sm:$0xff] %vm741, %v1269
      %1286 = vst.msk [vmem:[%s328 + $0x40] sm:$0xff] %vm741, %v1270
      %1287 = vst.msk [vmem:[%s328 + $0x48] sm:$0xff] %vm741, %v1271
      %1288 = vst.msk [vmem:[%s328 + $0x50] sm:$0xff] %vm741, %v1272
      %1289 = vst.msk [vmem:[%s328 + $0x58] sm:$0xff] %vm741, %v1273
      %1290 = vst.msk [vmem:[%s328 + $0x60] sm:$0xff] %vm741, %v1274
      %1291 = vst.msk [vmem:[%s328 + $0x68] sm:$0xff] %vm741, %v1275
      %1292 = vst.msk [vmem:[%s328 + $0x70] sm:$0xff] %vm741, %v1276
      %1293 = vst.msk [vmem:[%s328 + $0x78] sm:$0xff] %vm741, %v1277
      %s1294 = smul.u32 8, %s22
      %p1295 = scmp.lt.s32.totalorder %s21, 1
      %s1296 = scalar_select %p1295, %s21, 1
      %p1297 = scmp.lt.s32.totalorder %s1294, 15
      %s1298 = scalar_select %p1297, %s1294, 15
      %s1299 = smul.addr %s1298, 2
      %s1300 = smul.addr %s1296, 32
      %s1301 = sadd.s32 %s1299, %s1300
      %s1302 = smul.addr %s1301, 8
      %s1303 = scalar_lea.vmem %s6, %s1302
      // Predicated region
      $region45: #{tpu_custom_call.1} parent=43 // pred_check
        %p1304 = pneg %p189
      $region46: #{tpu_custom_call.1} parent=43 // pred_check_branch
        %1306 = sbr.rel (%p1304) target = $region48
      $region47: #{tpu_custom_call.1} parent=43 // pred_region
        %s1307 = smul.u32 8, %s22
      $region48: #{tpu_custom_call.1} parent=43 // pred_fallthru
        _
    $region44: #{tpu_custom_call.1} parent=5 // pred_fallthru
      _
    %p1308 = scmp.le.s32.totalorder 2, %s12
    // Predicated region
    $region49: #{tpu_custom_call.1} parent=5 // pred_check
      %p1309 = pneg %p1308
    $region50: #{tpu_custom_call.1} parent=5 // pred_check_branch
      %1311 = sbr.rel (%p1309) target = $region52
    $region51: #{tpu_custom_call.1} parent=5 // pred_region
      %s1312 = ssub.s32 %s12, 2
      // Predicated region
      $region53: #{tpu_custom_call.1} parent=51 // pred_check
        %p1313 = pneg %p195
      $region54: #{tpu_custom_call.1} parent=51 // pred_check_branch
        %1315 = sbr.rel (%p1313) target = $region56
      $region55: #{tpu_custom_call.1} parent=51 // pred_region
        %s1316 = smul.u32 8, %s24
        %p1317 = scmp.lt.s32.totalorder %s23, 1
        %s1318 = scalar_select %p1317, %s23, 1
        %p1319 = scmp.lt.s32.totalorder %s1316, 15
        %s1320 = scalar_select %p1319, %s1316, 15
        %s1321 = smul.addr %s1320, 2
        %s1322 = smul.addr %s1318, 32
        %s1323 = sadd.s32 %s1321, %s1322
        %s1324 = smul.addr %s1323, 8
        %s1325 = scalar_lea.vmem %s6, %s1324
      $region56: #{tpu_custom_call.1} parent=51 // pred_fallthru
        _
    $region52: #{tpu_custom_call.1} parent=5 // pred_fallthru
      _
  $region6: #{tpu_custom_call.1} parent=0 // loop_footer
    %s16 = sadd.s32 1, %s12
  $region7: #{tpu_custom_call.1} parent=0 // loop_footer_branch
    %11 = sbr.rel target = $region3
  $region8: #{tpu_custom_call.1} parent=0 // loop_exit
    _

</llo_original>
